<compile_context>
chip_gen: v5e
topology: v5e:2x2
jax: 0.10.0
libtpu: 0.0.40
codegen_flags: <defaults>
</compile_context>

<pallas_src>
import functools

import jax
import jax.numpy as jnp
from jax.experimental import pallas as pl
from jax.experimental.pallas import tpu as pltpu


def _convblock_kernel(x_ref, w_ref, b_ref, o_ref, patches_ref, *, H, W):
    """One batch element per grid step, flat-spatial layout.

    x_ref:       (1, Cin, H*W)   input, spatial flattened onto the lane axis
    w_ref:       (Cout, 9*Cin)   packed weights, row = (kh*3+kw)*Cin + ci
    b_ref:       (Cout, 1)       bias (broadcast along lanes)
    o_ref:       (1, Cout, H*W)  lane-dense output block
    patches_ref: (9*Cin, H*W)    f32 VMEM scratch holding the im2col matrix
    """
    HW = H * W
    cin = x_ref.shape[1]
    x = x_ref[0]                                            # (Cin, HW)

    # Flat lane index -> boundary masks for ReflectionPad2d(1).
    pos = jax.lax.broadcasted_iota(jnp.int32, (cin, HW), 1)
    if (W & (W - 1)) == 0:         # power-of-two W: cheap bitwise column index
        col = jnp.bitwise_and(pos, W - 1)
    else:                          # general W (not exercised in this test)
        col = pos % W
    row_lo = pos < W               # row == 0
    row_hi = pos >= (H - 1) * W    # row == H-1
    col_lo = col == 0              # col == 0
    col_hi = col == W - 1          # col == W-1

    # All 9 flat shifts of x: base[(dr, dc)][p] = x[p + dr*W + dc] (mod HW).
    # Wrapped lanes are never selected: the reflection masks redirect them.
    base = {}
    for dr in (-1, 0, 1):
        for dc in (-1, 0, 1):
            delta = dr * W + dc
            base[(dr, dc)] = x if delta == 0 else pltpu.roll(
                x, shift=(-delta) % HW, axis=1)

    def tap(dh, dw):
        """x at (row+dh, col+dw) with reflection at the image border."""
        if dh == 0 and dw == 0:
            return base[(0, 0)]
        c_out = None if dw == 0 else (col_lo if dw < 0 else col_hi)
        r_out = None if dh == 0 else (row_lo if dh < 0 else row_hi)
        if dh == 0:
            return jnp.where(c_out, base[(0, -dw)], base[(0, dw)])
        if dw == 0:
            return jnp.where(r_out, base[(-dh, 0)], base[(dh, 0)])
        v_in = jnp.where(c_out, base[(dh, -dw)], base[(dh, dw)])    # row valid
        v_rf = jnp.where(c_out, base[(-dh, -dw)], base[(-dh, dw)])  # row reflected
        return jnp.where(r_out, v_rf, v_in)

    # im2col: the 9 shifted copies stacked on the sublane axis in VMEM scratch.
    for kh in range(3):
        for kw in range(3):
            t = kh * 3 + kw
            patches_ref[pl.ds(t * cin, cin), :] = tap(kh - 1, kw - 1)

    # Single MXU matmul: (Cout, 9*Cin) x (9*Cin, HW) -> (Cout, HW).  The result
    # is already in the lane-dense output layout (spatial on lanes).
    acc = jnp.dot(w_ref[...], patches_ref[...],
                  preferred_element_type=jnp.float32)
    acc = acc + b_ref[...]
    # ELU (alpha=1.0), matching nn.ELU; exp(x)-1 is within ~1e-7 of expm1 here
    # and keeps the lowering on the plain EUP exp path.
    o_ref[0] = jnp.where(acc > 0, acc, jnp.exp(acc) - 1.0).astype(o_ref.dtype)


def conv_block(x_nchw, weight_oihw, bias):
    """ConvBlock forward: reflection-pad(1) -> conv3x3 -> ELU.

    x_nchw:      (N, Cin, H, W)    (PyTorch NCHW convention)
    weight_oihw: (Cout, Cin, 3, 3) as in nn.Conv2d
    bias:        (Cout,)
    returns:     (N, Cout, H, W)
    """
    N, Cin, H, W = x_nchw.shape
    Cout = weight_oihw.shape[0]
    assert H >= 2 and W >= 2, "ReflectionPad2d(1) requires H, W >= 2"
    HW = H * W

    # Wrapper glue is free (contiguous reshapes only) -- padding and layout are
    # handled inside the kernel, so there are no extra HBM passes.
    x_flat = x_nchw.reshape(N, Cin, HW)
    # Pack (Cout, Cin, 3, 3) -> (Cout, 9*Cin), row-major over (kh, kw, ci);
    # built once outside the kernel (hoists per-tap weight slicing / casts).
    w_packed = jnp.transpose(weight_oihw, (0, 2, 3, 1)).reshape(Cout, 9 * Cin)
    b_col = bias.reshape(Cout, 1)

    out_flat = pl.pallas_call(
        functools.partial(_convblock_kernel, H=H, W=W),
        out_shape=jax.ShapeDtypeStruct((N, Cout, HW), x_nchw.dtype),
        grid=(N,),
        in_specs=[
            pl.BlockSpec((1, Cin, HW), lambda n: (n, 0, 0)),
            pl.BlockSpec((Cout, 9 * Cin), lambda n: (0, 0)),
            pl.BlockSpec((Cout, 1), lambda n: (0, 0)),
        ],
        out_specs=pl.BlockSpec((1, Cout, HW), lambda n: (n, 0, 0)),
        scratch_shapes=[pltpu.VMEM((9 * Cin, HW), jnp.float32)],
        compiler_params=pltpu.CompilerParams(
            dimension_semantics=("parallel",)),
    )(x_flat, w_packed, b_col)

    return out_flat.reshape(N, Cout, H, W)


def _reference(x_nchw, weight_oihw, bias):
    """Pure-JAX reference (lax conv) for sanity checking."""
    x_pad = jnp.pad(x_nchw, ((0, 0), (0, 0), (1, 1), (1, 1)), mode="reflect")
    y = jax.lax.conv_general_dilated(
        x_pad, weight_oihw, window_strides=(1, 1), padding="VALID",
        dimension_numbers=("NCHW", "OIHW", "NCHW"))
    return jax.nn.elu(y + bias.reshape(1, -1, 1, 1))


if __name__ == "__main__":
    key = jax.random.PRNGKey(0)
    kx, kw, kb = jax.random.split(key, 3)

    N, Cin, H, W = 2, 4, 16, 16
    Cout = 8

    x = jax.random.normal(kx, (N, Cin, H, W), dtype=jnp.float32)
    # Deterministic parameter init (shapes from nn.Conv2d(Cin, Cout, 3)).
    fan_in = Cin * 3 * 3
    bound = 1.0 / (fan_in ** 0.5)
    weight = jax.random.uniform(kw, (Cout, Cin, 3, 3),
                                minval=-bound, maxval=bound, dtype=jnp.float32)
    bias = jax.random.uniform(kb, (Cout,),
                              minval=-bound, maxval=bound, dtype=jnp.float32)

    out = jax.jit(conv_block)(x, weight, bias)
    jax.block_until_ready(out)

    ref = _reference(x, weight, bias)
    assert out.shape == (N, Cout, H, W)
    assert jnp.allclose(out, ref, atol=1e-3, rtol=1e-3), "mismatch vs reference"

    print("KERNEL_OK")
</pallas_src>

<mosaic_0001>
module attributes {stable_mosaic.version = 11 : i64} {
  func.func @_convblock_kernel(%arg0: i32, %arg1: memref<1x4x256xf32, #tpu.memory_space<vmem>>, %arg2: memref<8x36xf32, #tpu.memory_space<vmem>>, %arg3: memref<8x1xf32, #tpu.memory_space<vmem>>, %arg4: memref<1x8x256xf32, #tpu.memory_space<vmem>>, %arg5: memref<36x256xf32, #tpu.memory_space<vmem>>) attributes {dimension_semantics = [#tpu.dimension_semantics<parallel>], iteration_bounds = array<i64: 2>, scalar_prefetch = 0 : i64, scratch_operands = 1 : i64, tpu.core_type = #tpu.core_type<tc>, window_params = [{transform_indices = @transform_0, window_bounds = array<i64: 1, 4, 256>}, {pipeline_mode = #tpu.pipeline_mode<synchronous>, transform_indices = @transform_1, window_bounds = array<i64: 8, 36>}, {pipeline_mode = #tpu.pipeline_mode<synchronous>, transform_indices = @transform_2, window_bounds = array<i64: 8, 1>}, {transform_indices = @transform_3, window_bounds = array<i64: 1, 8, 256>}]} {
    %c0 = arith.constant 0 : index
    %c0_0 = arith.constant 0 : index
    %c0_1 = arith.constant 0 : index
    %0 = vector.load %arg1[%c0, %c0_0, %c0_1] : memref<1x4x256xf32, #tpu.memory_space<vmem>>, vector<1x4x256xf32>
    %1 = vector.shape_cast %0 : vector<1x4x256xf32> to vector<4x256xf32>
    %2 = tpu.iota {dimensions = array<i32: 1>} : vector<4x256xi32>
    %c15_i32 = arith.constant 15 : i32
    %3 = vector.broadcast %c15_i32 : i32 to vector<4x256xi32>
    %4 = arith.andi %2, %3 : vector<4x256xi32>
    %c16_i32 = arith.constant 16 : i32
    %5 = vector.broadcast %c16_i32 : i32 to vector<4x256xi32>
    %6 = arith.cmpi slt, %2, %5 : vector<4x256xi32>
    %c240_i32 = arith.constant 240 : i32
    %7 = vector.broadcast %c240_i32 : i32 to vector<4x256xi32>
    %8 = arith.cmpi sge, %2, %7 : vector<4x256xi32>
    %c0_i32 = arith.constant 0 : i32
    %9 = vector.broadcast %c0_i32 : i32 to vector<4x256xi32>
    %10 = arith.cmpi eq, %4, %9 : vector<4x256xi32>
    %c15_i32_2 = arith.constant 15 : i32
    %11 = vector.broadcast %c15_i32_2 : i32 to vector<4x256xi32>
    %12 = arith.cmpi eq, %4, %11 : vector<4x256xi32>
    %c17_i32 = arith.constant 17 : i32
    %13 = tpu.dynamic_rotate %1 by %c17_i32 dim 1 : vector<4x256xf32>, i32 -> vector<4x256xf32>
    %c16_i32_3 = arith.constant 16 : i32
    %14 = tpu.dynamic_rotate %1 by %c16_i32_3 dim 1 : vector<4x256xf32>, i32 -> vector<4x256xf32>
    %c15_i32_4 = arith.constant 15 : i32
    %15 = tpu.dynamic_rotate %1 by %c15_i32_4 dim 1 : vector<4x256xf32>, i32 -> vector<4x256xf32>
    %c1_i32 = arith.constant 1 : i32
    %16 = tpu.dynamic_rotate %1 by %c1_i32 dim 1 : vector<4x256xf32>, i32 -> vector<4x256xf32>
    %c255_i32 = arith.constant 255 : i32
    %17 = tpu.dynamic_rotate %1 by %c255_i32 dim 1 : vector<4x256xf32>, i32 -> vector<4x256xf32>
    %c241_i32 = arith.constant 241 : i32
    %18 = tpu.dynamic_rotate %1 by %c241_i32 dim 1 : vector<4x256xf32>, i32 -> vector<4x256xf32>
    %c240_i32_5 = arith.constant 240 : i32
    %19 = tpu.dynamic_rotate %1 by %c240_i32_5 dim 1 : vector<4x256xf32>, i32 -> vector<4x256xf32>
    %c239_i32 = arith.constant 239 : i32
    %20 = tpu.dynamic_rotate %1 by %c239_i32 dim 1 : vector<4x256xf32>, i32 -> vector<4x256xf32>
    %21 = arith.select %10, %15, %13 : vector<4x256xi1>, vector<4x256xf32>
    %22 = arith.select %10, %20, %18 : vector<4x256xi1>, vector<4x256xf32>
    %23 = arith.select %6, %22, %21 : vector<4x256xi1>, vector<4x256xf32>
    %c0_6 = arith.constant 0 : index
    %c0_7 = arith.constant 0 : index
    %24 = vector.load %arg5[%c0_6, %c0_7] : memref<36x256xf32, #tpu.memory_space<vmem>>, vector<4x256xf32>
    tpu.vector_store %arg5[%c0_6, %c0_7], %23 {strides = array<i32>} : memref<36x256xf32, #tpu.memory_space<vmem>>, vector<4x256xf32>,
    %25 = arith.select %6, %19, %14 : vector<4x256xi1>, vector<4x256xf32>
    %c4 = arith.constant 4 : index
    %c0_8 = arith.constant 0 : index
    %26 = vector.load %arg5[%c4, %c0_8] : memref<36x256xf32, #tpu.memory_space<vmem>>, vector<4x256xf32>
    tpu.vector_store %arg5[%c4, %c0_8], %25 {strides = array<i32>} : memref<36x256xf32, #tpu.memory_space<vmem>>, vector<4x256xf32>,
    %27 = arith.select %12, %13, %15 : vector<4x256xi1>, vector<4x256xf32>
    %28 = arith.select %12, %18, %20 : vector<4x256xi1>, vector<4x256xf32>
    %29 = arith.select %6, %28, %27 : vector<4x256xi1>, vector<4x256xf32>
    %c8 = arith.constant 8 : index
    %c0_9 = arith.constant 0 : index
    %30 = vector.load %arg5[%c8, %c0_9] : memref<36x256xf32, #tpu.memory_space<vmem>>, vector<4x256xf32>
    tpu.vector_store %arg5[%c8, %c0_9], %29 {strides = array<i32>} : memref<36x256xf32, #tpu.memory_space<vmem>>, vector<4x256xf32>,
    %31 = arith.select %10, %17, %16 : vector<4x256xi1>, vector<4x256xf32>
    %c12 = arith.constant 12 : index
    %c0_10 = arith.constant 0 : index
    %32 = vector.load %arg5[%c12, %c0_10] : memref<36x256xf32, #tpu.memory_space<vmem>>, vector<4x256xf32>
    tpu.vector_store %arg5[%c12, %c0_10], %31 {strides = array<i32>} : memref<36x256xf32, #tpu.memory_space<vmem>>, vector<4x256xf32>,
    %c16 = arith.constant 16 : index
    %c0_11 = arith.constant 0 : index
    %33 = vector.load %arg5[%c16, %c0_11] : memref<36x256xf32, #tpu.memory_space<vmem>>, vector<4x256xf32>
    tpu.vector_store %arg5[%c16, %c0_11], %1 {strides = array<i32>} : memref<36x256xf32, #tpu.memory_space<vmem>>, vector<4x256xf32>,
    %34 = arith.select %12, %16, %17 : vector<4x256xi1>, vector<4x256xf32>
    %c20 = arith.constant 20 : index
    %c0_12 = arith.constant 0 : index
    %35 = vector.load %arg5[%c20, %c0_12] : memref<36x256xf32, #tpu.memory_space<vmem>>, vector<4x256xf32>
    tpu.vector_store %arg5[%c20, %c0_12], %34 {strides = array<i32>} : memref<36x256xf32, #tpu.memory_space<vmem>>, vector<4x256xf32>,
    %36 = arith.select %10, %20, %18 : vector<4x256xi1>, vector<4x256xf32>
    %37 = arith.select %10, %15, %13 : vector<4x256xi1>, vector<4x256xf32>
    %38 = arith.select %8, %37, %36 : vector<4x256xi1>, vector<4x256xf32>
    %c24 = arith.constant 24 : index
    %c0_13 = arith.constant 0 : index
    %39 = vector.load %arg5[%c24, %c0_13] : memref<36x256xf32, #tpu.memory_space<vmem>>, vector<4x256xf32>
    tpu.vector_store %arg5[%c24, %c0_13], %38 {strides = array<i32>} : memref<36x256xf32, #tpu.memory_space<vmem>>, vector<4x256xf32>,
    %40 = arith.select %8, %14, %19 : vector<4x256xi1>, vector<4x256xf32>
    %c28 = arith.constant 28 : index
    %c0_14 = arith.constant 0 : index
    %41 = vector.load %arg5[%c28, %c0_14] : memref<36x256xf32, #tpu.memory_space<vmem>>, vector<4x256xf32>
    tpu.vector_store %arg5[%c28, %c0_14], %40 {strides = array<i32>} : memref<36x256xf32, #tpu.memory_space<vmem>>, vector<4x256xf32>,
    %42 = arith.select %12, %18, %20 : vector<4x256xi1>, vector<4x256xf32>
    %43 = arith.select %12, %13, %15 : vector<4x256xi1>, vector<4x256xf32>
    %44 = arith.select %8, %43, %42 : vector<4x256xi1>, vector<4x256xf32>
    %c32 = arith.constant 32 : index
    %c0_15 = arith.constant 0 : index
    %45 = vector.load %arg5[%c32, %c0_15] : memref<36x256xf32, #tpu.memory_space<vmem>>, vector<4x256xf32>
    tpu.vector_store %arg5[%c32, %c0_15], %44 {strides = array<i32>} : memref<36x256xf32, #tpu.memory_space<vmem>>, vector<4x256xf32>,
    %c0_16 = arith.constant 0 : index
    %c0_17 = arith.constant 0 : index
    %46 = vector.load %arg2[%c0_16, %c0_17] : memref<8x36xf32, #tpu.memory_space<vmem>>, vector<8x36xf32>
    %c0_18 = arith.constant 0 : index
    %c0_19 = arith.constant 0 : index
    %47 = vector.load %arg5[%c0_18, %c0_19] : memref<36x256xf32, #tpu.memory_space<vmem>>, vector<36x256xf32>
    %cst = arith.constant dense<0.000000e+00> : vector<8x256xf32>
    %48 = tpu.matmul %46, %47, %cst {dimension_numbers = #tpu.dot_dimension_numbers<[1], [0], [0], [1], [0, 0, 1, 1], [], []>} : vector<8x36xf32>, vector<36x256xf32>, vector<8x256xf32> -> vector<8x256xf32>
    %c0_20 = arith.constant 0 : index
    %c0_21 = arith.constant 0 : index
    %49 = vector.load %arg3[%c0_20, %c0_21] : memref<8x1xf32, #tpu.memory_space<vmem>>, vector<8x1xf32>
    %50 = vector.broadcast %49 : vector<8x1xf32> to vector<8x256xf32>
    %51 = arith.addf %48, %50 : vector<8x256xf32>
    %cst_22 = arith.constant 0.000000e+00 : f32
    %52 = vector.broadcast %cst_22 : f32 to vector<8x256xf32>
    %53 = arith.cmpf ogt, %51, %52 : vector<8x256xf32>
    %54 = math.exp %51 : vector<8x256xf32>
    %cst_23 = arith.constant 1.000000e+00 : f32
    %55 = vector.broadcast %cst_23 : f32 to vector<8x256xf32>
    %56 = arith.subf %54, %55 : vector<8x256xf32>
    %57 = arith.select %53, %51, %56 : vector<8x256xi1>, vector<8x256xf32>
    %c0_24 = arith.constant 0 : index
    %c0_25 = arith.constant 0 : index
    %c0_26 = arith.constant 0 : index
    %58 = vector.load %arg4[%c0_24, %c0_25, %c0_26] : memref<1x8x256xf32, #tpu.memory_space<vmem>>, vector<1x8x256xf32>
    %59 = vector.shape_cast %58 : vector<1x8x256xf32> to vector<8x256xf32>
    %60 = vector.shape_cast %57 : vector<8x256xf32> to vector<1x8x256xf32>
    tpu.vector_store %arg4[%c0_24, %c0_25, %c0_26], %60 {strides = array<i32>} : memref<1x8x256xf32, #tpu.memory_space<vmem>>, vector<1x8x256xf32>,
    return
  }
  func.func @transform_0(%arg0: i32) -> (i32, i32, i32) {
    %c0_i32 = arith.constant 0 : i32
    %c0_i32_0 = arith.constant 0 : i32
    %c0_i32_1 = arith.constant 0 : i32
    return %arg0, %c0_i32, %c0_i32_0 : i32, i32, i32
  }
  func.func @transform_1(%arg0: i32) -> (i32, i32) {
    %c0_i32 = arith.constant 0 : i32
    %c0_i32_0 = arith.constant 0 : i32
    %c0_i32_1 = arith.constant 0 : i32
    return %c0_i32, %c0_i32_0 : i32, i32
  }
  func.func @transform_2(%arg0: i32) -> (i32, i32) {
    %c0_i32 = arith.constant 0 : i32
    %c0_i32_0 = arith.constant 0 : i32
    %c0_i32_1 = arith.constant 0 : i32
    return %c0_i32, %c0_i32_0 : i32, i32
  }
  func.func @transform_3(%arg0: i32) -> (i32, i32, i32) {
    %c0_i32 = arith.constant 0 : i32
    %c0_i32_0 = arith.constant 0 : i32
    %c0_i32_1 = arith.constant 0 : i32
    return %arg0, %c0_i32, %c0_i32_0 : i32, i32, i32
  }
}

</mosaic_0001>

<llo_original>
// kernel: conv_block.1
$region0: #{conv_block.1}
  #allocation0 [shape = 'u32[]', space=smem, size = 0x4, offset = 0x4, fixed_abs, tag = 'smem constant byte address 0x4 - core index']
  #allocation1 [shape = 'u32[72,128]{1,0:T(1,128)}', space=vmem, size = 0x9000, scoped, tag = 'internal scratch']
  #allocation2 [shape = 'f32[36,256]{1,0:T(8,128)}', space=vmem, size = 0xa000, scoped, tag = 'scratch operand']
  %s0 = inlined_call_operand.vmem [shape: f32[2,4,256], index: 0, kind: input, shape index: {}]
  %s1 = inlined_call_operand.vmem [shape: f32[8,36], index: 1, kind: input, shape index: {}]
  %s2 = inlined_call_operand.vmem [shape: f32[8,1], index: 2, kind: input, shape index: {}]
  %s3 = inlined_call_operand.vmem [shape: f32[2,8,256], index: 3, kind: output, shape index: {}]
  %s4 = sld [smem:[#allocation0]]
  $region45: #{conv_block.1} parent=0
    _
  %s6 = ssub.s32 1, %s4
  %s7 = scalar_select 0, %s6, %s4
  loop: start=0, step=1, limit=4
  $region2: #{conv_block.1} parent=0 // loop_pre_header
    _
  $region3: #{conv_block.1} parent=0 // loop_header
    %s9 = sphi 0, %s13
    %p10 = scmp.ge.s32.totalorder %s9, 4
    %s19 = sphi 0, %s21
    %s22 = sphi 0, %s19
    %s23 = sphi 0, %s22
    %s39 = sphi 0, %s23
    %s43 = sphi 0, %s43
    %s45 = sphi 0, %s43
    %s46 = sphi 0, %s45
    %s60 = sphi 0, %s46
    %s64 = sphi 0, %s64
    %s66 = sphi 0, %s64
    %s67 = sphi 0, %s66
    %s81 = sphi 0, %s67
    %s87 = sphi 0, %s89
    %s90 = sphi 0, %s87
    %s91 = sphi 0, %s90
    %s107 = sphi 0, %s91
  $region4: #{conv_block.1} parent=0 // loop_header_branch
    %12 = sbr.rel (%p10) target = $region8
  $region5: #{conv_block.1} parent=0 // loop_body
    %s14 = ssub.s32 %s9, 1
    %s15 = ssub.s32 %s9, 2
    %s16 = sadd.s32 %s9, 1
    %s17 = ssub.s32 %s9, %s16
    %p18 = scmp.eq.s32.totalorder %s17, 0
    %s20 = sadd.s32 %s19, 1
    %s21 = scalar_select %p18, %s19, %s20
    %p24 = pneg %p18
    %p25 = scmp.eq.s32.totalorder %s9, 1
    %p26 = por %p24, %p25
    %p27 = scmp.ne.s32.totalorder %s19, %s22
    %p28 = scmp.eq.s32.totalorder %s9, 0
    %p29 = por %p27, %p28
    %p30 = scmp.ne.s32.totalorder %s19, %s22
    %p31 = scmp.eq.s32.totalorder %s14, 1
    %p32 = por %p30, %p31
    %p33 = scmp.ne.s32.totalorder %s22, %s23
    %p34 = scmp.eq.s32.totalorder %s14, 0
    %p35 = por %p33, %p34
    %p36 = scmp.ne.s32.totalorder %s22, %s23
    %p37 = scmp.eq.s32.totalorder %s15, 1
    %p38 = por %p36, %p37
    %p40 = scmp.ne.s32.totalorder %s23, %s39
    %p41 = scmp.eq.s32.totalorder %s15, 0
    %p42 = por %p40, %p41
    %s44 = sadd.s32 %s43, 1
    %p47 = scmp.eq.s32.totalorder %s9, 1
    %p48 = scmp.ne.s32.totalorder %s43, %s45
    %p49 = scmp.eq.s32.totalorder %s9, 0
    %p50 = por %p48, %p49
    %p51 = scmp.ne.s32.totalorder %s43, %s45
    %p52 = scmp.eq.s32.totalorder %s14, 1
    %p53 = por %p51, %p52
    %p54 = scmp.ne.s32.totalorder %s45, %s46
    %p55 = scmp.eq.s32.totalorder %s14, 0
    %p56 = por %p54, %p55
    %p57 = scmp.ne.s32.totalorder %s45, %s46
    %p58 = scmp.eq.s32.totalorder %s15, 1
    %p59 = por %p57, %p58
    %p61 = scmp.ne.s32.totalorder %s46, %s60
    %p62 = scmp.eq.s32.totalorder %s15, 0
    %p63 = por %p61, %p62
    %s65 = sadd.s32 %s64, 1
    %p68 = scmp.eq.s32.totalorder %s9, 1
    %p69 = scmp.ne.s32.totalorder %s64, %s66
    %p70 = scmp.eq.s32.totalorder %s9, 0
    %p71 = por %p69, %p70
    %p72 = scmp.ne.s32.totalorder %s64, %s66
    %p73 = scmp.eq.s32.totalorder %s14, 1
    %p74 = por %p72, %p73
    %p75 = scmp.ne.s32.totalorder %s66, %s67
    %p76 = scmp.eq.s32.totalorder %s14, 0
    %p77 = por %p75, %p76
    %p78 = scmp.ne.s32.totalorder %s66, %s67
    %p79 = scmp.eq.s32.totalorder %s15, 1
    %p80 = por %p78, %p79
    %p82 = scmp.ne.s32.totalorder %s67, %s81
    %p83 = scmp.eq.s32.totalorder %s15, 0
    %p84 = por %p82, %p83
    %s85 = ssub.s32 %s9, %s16
    %p86 = scmp.eq.s32.totalorder %s85, 0
    %s88 = sadd.s32 %s87, 1
    %s89 = scalar_select %p86, %s87, %s88
    %p92 = pneg %p86
    %p93 = scmp.eq.s32.totalorder %s9, 1
    %p94 = por %p92, %p93
    %p95 = scmp.ne.s32.totalorder %s87, %s90
    %p96 = scmp.eq.s32.totalorder %s9, 0
    %p97 = por %p95, %p96
    %p98 = scmp.ne.s32.totalorder %s87, %s90
    %p99 = scmp.eq.s32.totalorder %s14, 1
    %p100 = por %p98, %p99
    %p101 = scmp.ne.s32.totalorder %s90, %s91
    %p102 = scmp.eq.s32.totalorder %s14, 0
    %p103 = por %p101, %p102
    %p104 = scmp.ne.s32.totalorder %s90, %s91
    %p105 = scmp.eq.s32.totalorder %s15, 1
    %p106 = por %p104, %p105
    %p108 = scmp.ne.s32.totalorder %s91, %s107
    %p109 = scmp.eq.s32.totalorder %s15, 0
    %p110 = por %p108, %p109
    %p111 = scmp.le.s32.totalorder 1, %s9
    %p112 = scmp.lt.s32.totalorder %s9, 3
    %p113 = pnand %p111, %p112
    %p114 = pneg %p113
    // Predicated region
    $region9: #{conv_block.1} parent=5 // pred_check
      _
    $region10: #{conv_block.1} parent=5 // pred_check_branch
      %116 = sbr.rel (%p113) target = $region12
    $region11: #{conv_block.1} parent=5 // pred_region
      %s117 = ssub.s32 %s9, 1
      // Predicated region
      $region13: #{conv_block.1} parent=11 // pred_check
        %p118 = pneg %p56
      $region14: #{conv_block.1} parent=11 // pred_check_branch
        %120 = sbr.rel (%p118) target = $region16
      $region15: #{conv_block.1} parent=11 // pred_region
        _
      $region16: #{conv_block.1} parent=11 // pred_fallthru
        _
      // Predicated region
      $region17: #{conv_block.1} parent=11 // pred_check
        %p121 = pneg %p77
      $region18: #{conv_block.1} parent=11 // pred_check_branch
        %123 = sbr.rel (%p121) target = $region20
      $region19: #{conv_block.1} parent=11 // pred_region
        _
      $region20: #{conv_block.1} parent=11 // pred_fallthru
        _
    $region12: #{conv_block.1} parent=5 // pred_fallthru
      _
    %p124 = scmp.lt.s32.totalorder %s9, 2
    // Predicated region
    $region21: #{conv_block.1} parent=5 // pred_check
      %p125 = pneg %p124
    $region22: #{conv_block.1} parent=5 // pred_check_branch
      %127 = sbr.rel (%p125) target = $region24
    $region23: #{conv_block.1} parent=5 // pred_region
      // Predicated region
      $region25: #{conv_block.1} parent=23 // pred_check
        %p128 = pneg %p29
      $region26: #{conv_block.1} parent=23 // pred_check_branch
        %130 = sbr.rel (%p128) target = $region28
      $region27: #{conv_block.1} parent=23 // pred_region
        %p131 = scmp.lt.s32.totalorder %s9, 1
        %s132 = scalar_select %p131, %s9, 1
        %s133 = smul.addr %s132, 2
        %s134 = smul.addr %s133, 4
        %s135 = scalar_lea.vmem %s0, %s134
      $region28: #{conv_block.1} parent=23 // pred_fallthru
        _
    $region24: #{conv_block.1} parent=5 // pred_fallthru
      _
    %p136 = scmp.le.s32.totalorder 1, %s9
    %p137 = scmp.lt.s32.totalorder %s9, 3
    %p138 = pnand %p136, %p137
    %p139 = pneg %p138
    // Predicated region
    $region29: #{conv_block.1} parent=5 // pred_check
      _
    $region30: #{conv_block.1} parent=5 // pred_check_branch
      %141 = sbr.rel (%p138) target = $region32
    $region31: #{conv_block.1} parent=5 // pred_region
      %s142 = ssub.s32 %s9, 1
      %p143 = scmp.lt.s32.totalorder %s14, 1
      %s144 = scalar_select %p143, %s14, 1
      %s145 = smul.addr %s144, 2
      %s146 = smul.addr %s145, 4
      %s147 = scalar_lea.vmem %s0, %s146
      %p148 = pneg %p35
      %p149 = pneg %p32
      %p150 = pneg %p56
      %p151 = pneg %p53
      %p152 = pneg %p77
      %p153 = pneg %p74
      %p154 = pneg %p103
      %p155 = pneg %p100
      %p156 = scmp.lt.s32.totalorder %s14, 1
      %s157 = scalar_select %p156, %s14, 1
      %s158 = smul.addr %s157, 2
      %s159 = smul.addr %s158, 8
      %s160 = scalar_lea.vmem %s3, %s159
      %p161 = scmp.lt.s32.totalorder %s14, 1
      %s162 = scalar_select %p161, %s14, 1
      %s163 = smul.addr %s162, 2
      %s164 = smul.addr %s163, 4
      %s165 = scalar_lea.vmem %s0, %s164
      %p166 = scmp.lt.s32.totalorder %s14, 1
      %s167 = scalar_select %p166, %s14, 1
      %s168 = smul.addr %s167, 2
      %s169 = smul.addr %s168, 8
      %s170 = scalar_lea.vmem %s3, %s169
      %v171 = vld [vmem:[%s165] sm:$0xff]
      %v172 = vlaneseq
      %v173 = vand.u32 %v172, 127
      %v174 = vadd.s32 %v173, 128
      %v175 = vand.u32 %v173, 15
      %v176 = vand.u32 %v174, 15
      %vm177 = vcmp.lt.s32.totalorder %v173, 16
      %vm178 = vcmp.lt.s32.totalorder %v174, 16
      %vm179 = vcmp.ge.s32.totalorder %v173, 240
      %vm180 = vcmp.ge.s32.totalorder %v174, 240
      %vm181 = vcmp.eq.s32.totalorder %v175, 0
      %vm182 = vcmp.eq.s32.totalorder %v176, 0
      %vm183 = vcmp.eq.s32.totalorder %v175, 15
      %vm184 = vcmp.eq.s32.totalorder %v176, 15
      %186 = vst [vmem:[#allocation1] ss:$2 sm:$0xff] %v171
      %v187 = vld.sshfl [vmem:[#allocation1] sm:$0xff pattern:$0x75316420]
      %v188 = vld.sshfl [vmem:[#allocation1 + $0x8] sm:$0xff pattern:$0x75316420]
      %191 = vrot.lane.b32.xlu0 %v187, 17
      %v192 = vpop.permute.xlu0 %191
      %193 = vrot.lane.b32.xlu0 %v188, 17
      %v194 = vpop.permute.xlu0 %193
      %vm195 = vcmp.lt.s32.totalorder %v173, 17
      %v196 = vsel %vm195, %v192, %v194
      %v197 = vsel %vm195, %v194, %v192
      %198 = vst [vmem:[#allocation1] ss:$2 sm:$0xff] %v171
      %v199 = vld.sshfl [vmem:[#allocation1] sm:$0xff pattern:$0x75316420]
      %v200 = vld.sshfl [vmem:[#allocation1 + $0x8] sm:$0xff pattern:$0x75316420]
      %203 = vrot.lane.b32.xlu0 %v199, 16
      %v204 = vpop.permute.xlu0 %203
      %205 = vrot.lane.b32.xlu0 %v200, 16
      %v206 = vpop.permute.xlu0 %205
      %v207 = vsel %vm177, %v204, %v206
      %v208 = vsel %vm177, %v206, %v204
      %209 = vst [vmem:[#allocation1] ss:$2 sm:$0xff] %v171
      %v210 = vld.sshfl [vmem:[#allocation1] sm:$0xff pattern:$0x75316420]
      %v211 = vld.sshfl [vmem:[#allocation1 + $0x8] sm:$0xff pattern:$0x75316420]
      %214 = vrot.lane.b32.xlu0 %v210, 15
      %v215 = vpop.permute.xlu0 %214
      %216 = vrot.lane.b32.xlu0 %v211, 15
      %v217 = vpop.permute.xlu0 %216
      %vm218 = vcmp.lt.s32.totalorder %v173, 15
      %v219 = vsel %vm218, %v215, %v217
      %v220 = vsel %vm218, %v217, %v215
      %221 = vst [vmem:[#allocation1] ss:$2 sm:$0xff] %v171
      %v222 = vld.sshfl [vmem:[#allocation1] sm:$0xff pattern:$0x75316420]
      %v223 = vld.sshfl [vmem:[#allocation1 + $0x8] sm:$0xff pattern:$0x75316420]
      %226 = vrot.lane.b32.xlu0 %v222, 1
      %v227 = vpop.permute.xlu0 %226
      %228 = vrot.lane.b32.xlu0 %v223, 1
      %v229 = vpop.permute.xlu0 %228
      %vm230 = vcmp.lt.s32.totalorder %v173, 1
      %v231 = vsel %vm230, %v227, %v229
      %v232 = vsel %vm230, %v229, %v227
      %233 = vst [vmem:[#allocation1] ss:$2 sm:$0xff] %v171
      %v234 = vld.sshfl [vmem:[#allocation1] sm:$0xff pattern:$0x75316420]
      %v235 = vld.sshfl [vmem:[#allocation1 + $0x8] sm:$0xff pattern:$0x75316420]
      %238 = vrot.lane.b32.xlu0 %v234, 127
      %v239 = vpop.permute.xlu0 %238
      %240 = vrot.lane.b32.xlu0 %v235, 127
      %v241 = vpop.permute.xlu0 %240
      %vm242 = vcmp.lt.s32.totalorder %v173, 127
      %v243 = vsel %vm242, %v239, %v241
      %v244 = vsel %vm242, %v241, %v239
      %245 = vst [vmem:[#allocation1] ss:$2 sm:$0xff] %v171
      %v246 = vld.sshfl [vmem:[#allocation1] sm:$0xff pattern:$0x75316420]
      %v247 = vld.sshfl [vmem:[#allocation1 + $0x8] sm:$0xff pattern:$0x75316420]
      %250 = vrot.lane.b32.xlu0 %v246, 113
      %v251 = vpop.permute.xlu0 %250
      %252 = vrot.lane.b32.xlu0 %v247, 113
      %v253 = vpop.permute.xlu0 %252
      %vm254 = vcmp.lt.s32.totalorder %v173, 113
      %v255 = vsel %vm254, %v251, %v253
      %v256 = vsel %vm254, %v253, %v251
      %257 = vst [vmem:[#allocation1] ss:$2 sm:$0xff] %v171
      %v258 = vld.sshfl [vmem:[#allocation1] sm:$0xff pattern:$0x75316420]
      %v259 = vld.sshfl [vmem:[#allocation1 + $0x8] sm:$0xff pattern:$0x75316420]
      %262 = vrot.lane.b32.xlu0 %v258, 112
      %v263 = vpop.permute.xlu0 %262
      %264 = vrot.lane.b32.xlu0 %v259, 112
      %v265 = vpop.permute.xlu0 %264
      %vm266 = vcmp.lt.s32.totalorder %v173, 112
      %v267 = vsel %vm266, %v263, %v265
      %v268 = vsel %vm266, %v265, %v263
      %269 = vst [vmem:[#allocation1] ss:$2 sm:$0xff] %v171
      %v270 = vld.sshfl [vmem:[#allocation1] sm:$0xff pattern:$0x75316420]
      %v271 = vld.sshfl [vmem:[#allocation1 + $0x8] sm:$0xff pattern:$0x75316420]
      %274 = vrot.lane.b32.xlu0 %v270, 111
      %v275 = vpop.permute.xlu0 %274
      %276 = vrot.lane.b32.xlu0 %v271, 111
      %v277 = vpop.permute.xlu0 %276
      %vm278 = vcmp.lt.s32.totalorder %v173, 111
      %v279 = vsel %vm278, %v275, %v277
      %v280 = vsel %vm278, %v277, %v275
      %v281 = vsel %vm181, %v220, %v197
      %v282 = vsel %vm182, %v219, %v196
      %v283 = vsel %vm181, %v279, %v255
      %v284 = vsel %vm182, %v280, %v256
      %v285 = vsel %vm177, %v283, %v281
      %v286 = vsel %vm178, %v284, %v282
      %287 = vst [vmem:[#allocation2] sm:$0xf] %v285
      %288 = vst [vmem:[#allocation2 + $0x8] sm:$0xf] %v286
      %v289 = vsel %vm177, %v267, %v208
      %v290 = vsel %vm178, %v268, %v207
      %v293 = vrot.slane %v289, 4
      %v294 = vrot.slane %v290, 4
      %297 = vst [vmem:[#allocation2] sm:$0xf0] %v293
      %298 = vst [vmem:[#allocation2 + $0x8] sm:$0xf0] %v294
      %v299 = vsel %vm183, %v197, %v220
      %v300 = vsel %vm184, %v196, %v219
      %v301 = vsel %vm183, %v255, %v279
      %v302 = vsel %vm184, %v256, %v280
      %v303 = vsel %vm177, %v301, %v299
      %v304 = vsel %vm178, %v302, %v300
      %305 = vst [vmem:[#allocation2 + $0x10] sm:$0xf] %v303
      %306 = vst [vmem:[#allocation2 + $0x18] sm:$0xf] %v304
      %v307 = vsel %vm181, %v243, %v232
      %v308 = vsel %vm182, %v244, %v231
      %v311 = vrot.slane %v307, 4
      %v312 = vrot.slane %v308, 4
      %315 = vst [vmem:[#allocation2 + $0x10] sm:$0xf0] %v311
      %316 = vst [vmem:[#allocation2 + $0x18] sm:$0xf0] %v312
      %317 = vst [vmem:[#allocation1] ss:$2 sm:$0xff] %v171
      %v318 = vld.sshfl [vmem:[#allocation1] sm:$0xff pattern:$0x75316420]
      %v319 = vld.sshfl [vmem:[#allocation1 + $0x8] sm:$0xff pattern:$0x75316420]
      %322 = vst [vmem:[#allocation2 + $0x20] sm:$0xf] %v318
      %323 = vst [vmem:[#allocation2 + $0x28] sm:$0xf] %v319
      %v324 = vsel %vm183, %v232, %v243
      %v325 = vsel %vm184, %v231, %v244
      %v328 = vrot.slane %v324, 4
      %v329 = vrot.slane %v325, 4
      %332 = vst [vmem:[#allocation2 + $0x20] sm:$0xf0] %v328
      %333 = vst [vmem:[#allocation2 + $0x28] sm:$0xf0] %v329
      %v334 = vsel %vm179, %v281, %v283
      %v335 = vsel %vm180, %v282, %v284
      %336 = vst [vmem:[#allocation2 + $0x30] sm:$0xf] %v334
      %337 = vst [vmem:[#allocation2 + $0x38] sm:$0xf] %v335
      %v338 = vsel %vm179, %v208, %v267
      %v339 = vsel %vm180, %v207, %v268
      %v342 = vrot.slane %v338, 4
      %v343 = vrot.slane %v339, 4
      %346 = vst [vmem:[#allocation2 + $0x30] sm:$0xf0] %v342
      %347 = vst [vmem:[#allocation2 + $0x38] sm:$0xf0] %v343
      %v348 = vsel %vm179, %v299, %v301
      %v349 = vsel %vm180, %v300, %v302
      %350 = vst [vmem:[#allocation2 + $0x40] sm:$0xf] %v348
      %351 = vst [vmem:[#allocation2 + $0x48] sm:$0xf] %v349
      %v352 = vld [vmem:[%s1] sm:$0xff]
      %v353 = vld [vmem:[#allocation2] sm:$0xff]
      %v354 = vld [vmem:[#allocation2 + $0x8] sm:$0xff]
      %v355 = vld [vmem:[#allocation2 + $0x10] sm:$0xff]
      %v356 = vld [vmem:[#allocation2 + $0x18] sm:$0xff]
      %v357 = vld [vmem:[#allocation2 + $0x20] sm:$0xff]
      %v358 = vld [vmem:[#allocation2 + $0x28] sm:$0xff]
      %v359 = vld [vmem:[#allocation2 + $0x30] sm:$0xff]
      %v360 = vld [vmem:[#allocation2 + $0x38] sm:$0xff]
      %v361 = vld [vmem:[#allocation2 + $0x40] sm:$0xf]
      %v362 = vld [vmem:[#allocation2 + $0x48] sm:$0xf]
      %v363 = vld [vmem:[%s2] sm:$0xff]
      %365 = vset.pattern.permute.xlu0 0
      %366 = vperm.xlu0 %365, %v363
      %v367 = vpop.permute.xlu0 %366
      %vm369 = vcmask 293888
      %v371 = vsel %vm369, %v352, 0
      %vm373 = vcmask 1043456
      %v375 = vsel %vm373, %v361, 0
      %v378 = vsel %vm373, %v362, 0
      %380 = vmatpush.msra.mxu0 0.0
      %381 = vmatpush.msra.mxu0 0.0
      %382 = vmatpush.msra.mxu0 0.0
      %383 = vmatpush.msra.mxu0 0.0
      %384 = vmatpush.msra.mxu0 0.0
      %385 = vmatpush.msra.mxu0 0.0
      %386 = vmatpush.msra.mxu0 0.0
      %387 = vmatpush.msra.mxu0 0.0
      %388 = vmatpush.msra.mxu0 0.0
      %389 = vmatpush.msra.mxu0 0.0
      %390 = vmatpush.msra.mxu0 0.0
      %391 = vmatpush.msra.mxu0 %v375
      %392 = vmatpush.msra.mxu0 %v359
      %393 = vmatpush.msra.mxu0 %v357
      %394 = vmatpush.msra.mxu0 %v355
      %395 = vmatpush.msra.mxu0 %v353
      %396 = vmatmul.f32.gmra.mxu0 %v371
      %v397 = vpop.f32.mrf.mxu0
      %v398 = vadd.f32 %v367, %v397
      %399 = vdwg.mxu0
      %400 = vmatpush.msra.mxu0 0.0
      %401 = vmatpush.msra.mxu0 0.0
      %402 = vmatpush.msra.mxu0 0.0
      %403 = vmatpush.msra.mxu0 0.0
      %404 = vmatpush.msra.mxu0 0.0
      %405 = vmatpush.msra.mxu0 0.0
      %406 = vmatpush.msra.mxu0 0.0
      %407 = vmatpush.msra.mxu0 0.0
      %408 = vmatpush.msra.mxu0 0.0
      %409 = vmatpush.msra.mxu0 0.0
      %410 = vmatpush.msra.mxu0 0.0
      %411 = vmatpush.msra.mxu0 %v378
      %412 = vmatpush.msra.mxu0 %v360
      %413 = vmatpush.msra.mxu0 %v358
      %414 = vmatpush.msra.mxu0 %v356
      %415 = vmatpush.msra.mxu0 %v354
      %416 = vmatmul.f32.gmra.mxu0 %v371
      %v417 = vpop.f32.mrf.mxu0
      %v418 = vadd.f32 %v367, %v417
      %419 = vdwg.mxu0
      %vm420 = vcmp.gt.f32.partialorder %v398, 0.0
      %vm421 = vcmp.gt.f32.partialorder %v418, 0.0
      %v422 = vmul.f32 %v398, 1.442695
      %v423 = vpow.pop %v422
      %v424 = vmul.f32 %v418, 1.442695
      %v425 = vpow.pop %v424
      %v426 = vsub.f32 %v423, 1.0
      %v427 = vsub.f32 %v425, 1.0
      %v428 = vsel %vm420, %v398, %v426
      %v429 = vsel %vm421, %v418, %v427
      %430 = vst [vmem:[%s170] sm:$0xff] %v428
      %431 = vst [vmem:[%s170 + $0x8] sm:$0xff] %v429
      %p432 = scmp.lt.s32.totalorder %s14, 1
      %s433 = scalar_select %p432, %s14, 1
      %s434 = smul.addr %s433, 2
      %s435 = smul.addr %s434, 8
      %s436 = scalar_lea.vmem %s3, %s435
      // Predicated region
      $region33: #{conv_block.1} parent=31 // pred_check
        %p437 = pneg %p100
      $region34: #{conv_block.1} parent=31 // pred_check_branch
        %439 = sbr.rel (%p437) target = $region36
      $region35: #{conv_block.1} parent=31 // pred_region
        _
      $region36: #{conv_block.1} parent=31 // pred_fallthru
        _
    $region32: #{conv_block.1} parent=5 // pred_fallthru
      _
    %p440 = scmp.le.s32.totalorder 2, %s9
    // Predicated region
    $region37: #{conv_block.1} parent=5 // pred_check
      %p441 = pneg %p440
    $region38: #{conv_block.1} parent=5 // pred_check_branch
      %443 = sbr.rel (%p441) target = $region40
    $region39: #{conv_block.1} parent=5 // pred_region
      %s444 = ssub.s32 %s9, 2
      // Predicated region
      $region41: #{conv_block.1} parent=39 // pred_check
        %p445 = pneg %p106
      $region42: #{conv_block.1} parent=39 // pred_check_branch
        %447 = sbr.rel (%p445) target = $region44
      $region43: #{conv_block.1} parent=39 // pred_region
        %p448 = scmp.lt.s32.totalorder %s15, 1
        %s449 = scalar_select %p448, %s15, 1
        %s450 = smul.addr %s449, 2
        %s451 = smul.addr %s450, 8
        %s452 = scalar_lea.vmem %s3, %s451
      $region44: #{conv_block.1} parent=39 // pred_fallthru
        _
    $region40: #{conv_block.1} parent=5 // pred_fallthru
      _
  $region6: #{conv_block.1} parent=0 // loop_footer
    %s13 = sadd.s32 1, %s9
  $region7: #{conv_block.1} parent=0 // loop_footer_branch
    %8 = sbr.rel target = $region3
  $region8: #{conv_block.1} parent=0 // loop_exit
    _

</llo_original>
